<compile_context>
chip_gen: v5e
topology: v5e:2x2
jax: 0.10.0
libtpu: 0.0.40
codegen_flags: <defaults>
</compile_context>

<pallas_src>
import functools

import jax
import jax.numpy as jnp
from jax.experimental import pallas as pl
from jax.experimental.pallas import tpu as pltpu

BN_EPS = 1e-5
LANE = 128


def _round_up(n, m):
    return ((n + m - 1) // m) * m


def _mlp_bn_kernel(x_ref, w_ref, p_ref, o_ref, act_ref):
    """One layer per grid step: Linear + ReLU + BatchNorm1d (batch stats)."""
    layer = pl.program_id(0)
    n_layers = pl.num_programs(0)

    @pl.when(layer == 0)
    def _():
        act_ref[...] = x_ref[...].astype(jnp.float32)

    # Linear on the MXU: bf16 inputs, f32 accumulation.
    y = jnp.dot(
        act_ref[...].astype(jnp.bfloat16),
        w_ref[...],
        preferred_element_type=jnp.float32,
    )
    y = y + p_ref[0:1, :]          # bias  (row 0 of packed params)
    y = jnp.maximum(y, 0.0)        # ReLU

    # BatchNorm1d, training mode, one-pass stats (f32): var = E[y^2] - mean^2.
    inv_b = 1.0 / y.shape[0]
    s1 = jnp.sum(y, axis=0, keepdims=True)
    s2 = jnp.sum(y * y, axis=0, keepdims=True)
    mean = s1 * inv_b
    var = jnp.maximum(s2 * inv_b - mean * mean, 0.0)
    y = (y - mean) * jax.lax.rsqrt(var + BN_EPS)
    y = y * p_ref[1:2, :] + p_ref[2:3, :]   # gamma (row 1), beta (row 2)
    # Dropout(p=0.0) == identity.

    act_ref[...] = y

    @pl.when(layer == n_layers - 1)
    def _():
        o_ref[...] = y.astype(o_ref.dtype)


def _vmem_limit_bytes(batch, d_pad):
    act = batch * d_pad * 4
    w_tile = d_pad * d_pad * 2          # bf16 weight block
    p_tile = 8 * d_pad * 4
    # double-buffered in/out blocks + resident activation scratch, 2x slack
    need = 2 * (act + w_tile + p_tile) + 2 * act + act
    return int(min(max(2 * need, 8 << 20), 48 << 20))


@functools.partial(jax.jit, static_argnames=("output_size",))
def mlp_batchnorm_forward(x, w_all, p_all, *, output_size):
    """x: (B, input_size) f32; w_all: (L, Dp, Dp) bf16; p_all: (L, 8, Dp) f32."""
    batch, in_size = x.shape
    n_layers, d_pad, _ = w_all.shape

    # Zero-pad the input features to the padded lane width.
    x_pad = jnp.zeros((batch, d_pad), jnp.float32).at[:, :in_size].set(x)

    out_pad = pl.pallas_call(
        _mlp_bn_kernel,
        out_shape=jax.ShapeDtypeStruct((batch, d_pad), jnp.float32),
        grid_spec=pltpu.PrefetchScalarGridSpec(
            num_scalar_prefetch=0,
            grid=(n_layers,),
            in_specs=[
                pl.BlockSpec((batch, d_pad), lambda l: (0, 0)),
                pl.BlockSpec((None, d_pad, d_pad), lambda l: (l, 0, 0)),
                pl.BlockSpec((None, 8, d_pad), lambda l: (l, 0, 0)),
            ],
            out_specs=pl.BlockSpec((batch, d_pad), lambda l: (0, 0)),
            scratch_shapes=[pltpu.VMEM((batch, d_pad), jnp.float32)],
        ),
        compiler_params=pltpu.CompilerParams(
            dimension_semantics=("arbitrary",),   # layer axis carries state
            vmem_limit_bytes=_vmem_limit_bytes(batch, d_pad),
        ),
    )(x_pad, w_all, p_all)

    # Drop padded lanes (they are exactly zero by construction).
    return out_pad[:, :output_size]


def init_params(key, input_size, output_size, hidden_sizes):
    """PyTorch-style init, zero-padded to a common 128-lane feature width.

    Returns:
      w_all: (L, Dp, Dp) bf16  -- Linear weights, stored (in, out), padded.
      p_all: (L, 8, Dp)  f32   -- row 0 bias, row 1 gamma, row 2 beta, rest 0.
    """
    layer_sizes = [input_size] + list(hidden_sizes) + [output_size]
    d_pad = _round_up(max(layer_sizes), LANE)

    w_blocks, p_blocks = [], []
    for i in range(len(layer_sizes) - 1):
        din, dout = layer_sizes[i], layer_sizes[i + 1]
        key, kw, kb = jax.random.split(key, 3)
        bound = 1.0 / float(din) ** 0.5
        # nn.Linear stores (out, in); we keep the transposed (in, out) layout.
        w = jax.random.uniform(kw, (din, dout), jnp.float32, -bound, bound)
        b = jax.random.uniform(kb, (dout,), jnp.float32, -bound, bound)

        w_pad = jnp.zeros((d_pad, d_pad), jnp.float32).at[:din, :dout].set(w)
        p_pad = jnp.zeros((8, d_pad), jnp.float32)
        p_pad = p_pad.at[0, :dout].set(b)                       # bias
        p_pad = p_pad.at[1, :dout].set(jnp.ones((dout,)))       # BN gamma
        # row 2 (BN beta) stays zero (PyTorch default init).
        w_blocks.append(w_pad.astype(jnp.bfloat16))
        p_blocks.append(p_pad)

    return jnp.stack(w_blocks), jnp.stack(p_blocks)


def ref_forward(x, w_all, p_all, output_size):
    """Pure-JAX reference mirroring the kernel's mixed-precision matmul."""
    in_size = x.shape[1]
    d_pad = w_all.shape[1]
    act = jnp.zeros((x.shape[0], d_pad), jnp.float32).at[:, :in_size].set(x)
    for l in range(w_all.shape[0]):
        y = jnp.dot(act.astype(jnp.bfloat16), w_all[l],
                    preferred_element_type=jnp.float32)
        y = jnp.maximum(y + p_all[l, 0:1, :], 0.0)
        m = jnp.mean(y, axis=0, keepdims=True)
        v = jnp.mean((y - m) ** 2, axis=0, keepdims=True)
        act = (y - m) / jnp.sqrt(v + BN_EPS) * p_all[l, 1:2, :] + p_all[l, 2:3, :]
    return act[:, :output_size]


if __name__ == "__main__":
    input_size = 32
    hidden_sizes = [64]
    output_size = 16
    batch = 128  # >=128 rows so the MXU systolic array is actually used

    key = jax.random.PRNGKey(0)
    kx, kp = jax.random.split(key)
    x = jax.random.normal(kx, (batch, input_size), jnp.float32)
    w_all, p_all = init_params(kp, input_size, output_size, hidden_sizes)

    out = mlp_batchnorm_forward(x, w_all, p_all, output_size=output_size)
    jax.block_until_ready(out)

    ref = ref_forward(x, w_all, p_all, output_size)
    assert out.shape == (batch, output_size)
    assert jnp.allclose(out, ref, atol=1e-3, rtol=1e-3), float(
        jnp.max(jnp.abs(out - ref)))
    print("KERNEL_OK")
</pallas_src>

<mosaic_0001>
module attributes {stable_mosaic.version = 11 : i64} {
  func.func @_mlp_bn_kernel(%arg0: i32, %arg1: memref<128x128xf32, #tpu.memory_space<vmem>>, %arg2: memref<1x128x128xbf16, #tpu.memory_space<vmem>>, %arg3: memref<1x8x128xf32, #tpu.memory_space<vmem>>, %arg4: memref<128x128xf32, #tpu.memory_space<vmem>>, %arg5: memref<128x128xf32, #tpu.memory_space<vmem>>) attributes {dimension_semantics = [#tpu.dimension_semantics<arbitrary>], iteration_bounds = array<i64: 2>, scalar_prefetch = 0 : i64, scratch_operands = 1 : i64, tpu.core_type = #tpu.core_type<tc>, window_params = [{pipeline_mode = #tpu.pipeline_mode<synchronous>, transform_indices = @transform_0, window_bounds = array<i64: 128, 128>}, {transform_indices = @transform_1, window_bounds = array<i64: 1, 128, 128>}, {transform_indices = @transform_2, window_bounds = array<i64: 1, 8, 128>}, {pipeline_mode = #tpu.pipeline_mode<synchronous>, transform_indices = @transform_3, window_bounds = array<i64: 128, 128>}]} {
    %c0_i32 = arith.constant 0 : i32
    %0 = arith.cmpi eq, %arg0, %c0_i32 : i32
    %1 = arith.extui %0 : i1 to i32
    %c0_i32_0 = arith.constant 0 : i32
    %2 = arith.cmpi ne, %1, %c0_i32_0 : i32
    scf.if %2 {
      %c0_22 = arith.constant 0 : index
      %c0_23 = arith.constant 0 : index
      %46 = vector.load %arg1[%c0_22, %c0_23] : memref<128x128xf32, #tpu.memory_space<vmem>>, vector<128x128xf32>
      %c0_24 = arith.constant 0 : index
      %c0_25 = arith.constant 0 : index
      %47 = vector.load %arg5[%c0_24, %c0_25] : memref<128x128xf32, #tpu.memory_space<vmem>>, vector<128x128xf32>
      tpu.vector_store %arg5[%c0_24, %c0_25], %46 {strides = array<i32>} : memref<128x128xf32, #tpu.memory_space<vmem>>, vector<128x128xf32>,
    } else {
    }
    %c0 = arith.constant 0 : index
    %c0_1 = arith.constant 0 : index
    %3 = vector.load %arg5[%c0, %c0_1] : memref<128x128xf32, #tpu.memory_space<vmem>>, vector<128x128xf32>
    %4 = arith.truncf %3 : vector<128x128xf32> to vector<128x128xbf16>
    %c0_2 = arith.constant 0 : index
    %c0_3 = arith.constant 0 : index
    %c0_4 = arith.constant 0 : index
    %5 = vector.load %arg2[%c0_2, %c0_3, %c0_4] : memref<1x128x128xbf16, #tpu.memory_space<vmem>>, vector<1x128x128xbf16>
    %6 = vector.shape_cast %5 : vector<1x128x128xbf16> to vector<128x128xbf16>
    %cst = arith.constant dense<0.000000e+00> : vector<128x128xf32>
    %7 = tpu.matmul %4, %6, %cst {dimension_numbers = #tpu.dot_dimension_numbers<[1], [0], [0], [1], [0, 0, 1, 1], [], []>} : vector<128x128xbf16>, vector<128x128xbf16>, vector<128x128xf32> -> vector<128x128xf32>
    %c0_5 = arith.constant 0 : index
    %c0_6 = arith.constant 0 : index
    %c0_7 = arith.constant 0 : index
    %8 = vector.load %arg3[%c0_5, %c0_6, %c0_7] : memref<1x8x128xf32, #tpu.memory_space<vmem>>, vector<1x1x128xf32>
    %9 = vector.shape_cast %8 : vector<1x1x128xf32> to vector<1x128xf32>
    %10 = vector.broadcast %9 : vector<1x128xf32> to vector<128x128xf32>
    %11 = arith.addf %7, %10 : vector<128x128xf32>
    %cst_8 = arith.constant 0.000000e+00 : f32
    %12 = vector.broadcast %cst_8 : f32 to vector<128x128xf32>
    %13 = arith.maximumf %11, %12 : vector<128x128xf32>
    %cst_9 = arith.constant dense<0.000000e+00> : vector<128xf32>
    %14 = vector.multi_reduction <add>, %13, %cst_9 [0] : vector<128x128xf32> to vector<128xf32>
    %15 = vector.shape_cast %14 : vector<128xf32> to vector<1x128xf32>
    %16 = arith.mulf %13, %13 : vector<128x128xf32>
    %cst_10 = arith.constant dense<0.000000e+00> : vector<128xf32>
    %17 = vector.multi_reduction <add>, %16, %cst_10 [0] : vector<128x128xf32> to vector<128xf32>
    %18 = vector.shape_cast %17 : vector<128xf32> to vector<1x128xf32>
    %cst_11 = arith.constant 7.812500e-03 : f32
    %19 = vector.broadcast %cst_11 : f32 to vector<1x128xf32>
    %20 = arith.mulf %15, %19 : vector<1x128xf32>
    %cst_12 = arith.constant 7.812500e-03 : f32
    %21 = vector.broadcast %cst_12 : f32 to vector<1x128xf32>
    %22 = arith.mulf %18, %21 : vector<1x128xf32>
    %23 = arith.mulf %20, %20 : vector<1x128xf32>
    %24 = arith.subf %22, %23 : vector<1x128xf32>
    %cst_13 = arith.constant 0.000000e+00 : f32
    %25 = vector.broadcast %cst_13 : f32 to vector<1x128xf32>
    %26 = arith.maximumf %24, %25 : vector<1x128xf32>
    %27 = vector.broadcast %20 : vector<1x128xf32> to vector<128x128xf32>
    %28 = arith.subf %13, %27 : vector<128x128xf32>
    %cst_14 = arith.constant 9.99999974E-6 : f32
    %29 = vector.broadcast %cst_14 : f32 to vector<1x128xf32>
    %30 = arith.addf %26, %29 : vector<1x128xf32>
    %31 = math.rsqrt %30 : vector<1x128xf32>
    %32 = vector.broadcast %31 : vector<1x128xf32> to vector<128x128xf32>
    %33 = arith.mulf %28, %32 : vector<128x128xf32>
    %c0_15 = arith.constant 0 : index
    %c1 = arith.constant 1 : index
    %c0_16 = arith.constant 0 : index
    %34 = vector.load %arg3[%c0_15, %c1, %c0_16] : memref<1x8x128xf32, #tpu.memory_space<vmem>>, vector<1x1x128xf32>
    %35 = vector.shape_cast %34 : vector<1x1x128xf32> to vector<1x128xf32>
    %36 = vector.broadcast %35 : vector<1x128xf32> to vector<128x128xf32>
    %37 = arith.mulf %33, %36 : vector<128x128xf32>
    %c0_17 = arith.constant 0 : index
    %c2 = arith.constant 2 : index
    %c0_18 = arith.constant 0 : index
    %38 = vector.load %arg3[%c0_17, %c2, %c0_18] : memref<1x8x128xf32, #tpu.memory_space<vmem>>, vector<1x1x128xf32>
    %39 = vector.shape_cast %38 : vector<1x1x128xf32> to vector<1x128xf32>
    %40 = vector.broadcast %39 : vector<1x128xf32> to vector<128x128xf32>
    %41 = arith.addf %37, %40 : vector<128x128xf32>
    %c0_19 = arith.constant 0 : index
    %c0_20 = arith.constant 0 : index
    %42 = vector.load %arg5[%c0_19, %c0_20] : memref<128x128xf32, #tpu.memory_space<vmem>>, vector<128x128xf32>
    tpu.vector_store %arg5[%c0_19, %c0_20], %41 {strides = array<i32>} : memref<128x128xf32, #tpu.memory_space<vmem>>, vector<128x128xf32>,
    %c1_i32 = arith.constant 1 : i32
    %43 = arith.cmpi eq, %arg0, %c1_i32 : i32
    %44 = arith.extui %43 : i1 to i32
    %c0_i32_21 = arith.constant 0 : i32
    %45 = arith.cmpi ne, %44, %c0_i32_21 : i32
    scf.if %45 {
      %c0_22 = arith.constant 0 : index
      %c0_23 = arith.constant 0 : index
      %46 = vector.load %arg4[%c0_22, %c0_23] : memref<128x128xf32, #tpu.memory_space<vmem>>, vector<128x128xf32>
      tpu.vector_store %arg4[%c0_22, %c0_23], %41 {strides = array<i32>} : memref<128x128xf32, #tpu.memory_space<vmem>>, vector<128x128xf32>,
    } else {
    }
    return
  }
  func.func @transform_0(%arg0: i32) -> (i32, i32) {
    %c0_i32 = arith.constant 0 : i32
    %c0_i32_0 = arith.constant 0 : i32
    %c0_i32_1 = arith.constant 0 : i32
    return %c0_i32, %c0_i32_0 : i32, i32
  }
  func.func @transform_1(%arg0: i32) -> (i32, i32, i32) {
    %c0_i32 = arith.constant 0 : i32
    %c0_i32_0 = arith.constant 0 : i32
    %c0_i32_1 = arith.constant 0 : i32
    return %arg0, %c0_i32, %c0_i32_0 : i32, i32, i32
  }
  func.func @transform_2(%arg0: i32) -> (i32, i32, i32) {
    %c0_i32 = arith.constant 0 : i32
    %c0_i32_0 = arith.constant 0 : i32
    %c0_i32_1 = arith.constant 0 : i32
    return %arg0, %c0_i32, %c0_i32_0 : i32, i32, i32
  }
  func.func @transform_3(%arg0: i32) -> (i32, i32) {
    %c0_i32 = arith.constant 0 : i32
    %c0_i32_0 = arith.constant 0 : i32
    %c0_i32_1 = arith.constant 0 : i32
    return %c0_i32, %c0_i32_0 : i32, i32
  }
}

</mosaic_0001>

<llo_original>
// kernel: mlp_batchnorm_forward.1
$region0: #{mlp_batchnorm_forward.1}
  #allocation0 [shape = 'u32[]', space=smem, size = 0x4, offset = 0x4, fixed_abs, tag = 'smem constant byte address 0x4 - core index']
  #allocation1 [shape = 'u32[72,128]{1,0:T(1,128)}', space=vmem, size = 0x9000, scoped, tag = 'internal scratch']
  #allocation2 [shape = 'f32[128,128]{1,0:T(8,128)}', space=vmem, size = 0x10000, scoped, tag = 'scratch operand']
  %s0 = inlined_call_operand.vmem [shape: f32[128,128], index: 0, kind: input, shape index: {}]
  %s1 = inlined_call_operand.vmem [shape: bf16[2,128,128], index: 1, kind: input, shape index: {}]
  %s2 = inlined_call_operand.vmem [shape: f32[2,8,128], index: 2, kind: input, shape index: {}]
  %s3 = inlined_call_operand.vmem [shape: f32[128,128], index: 3, kind: output, shape index: {}]
  %s4 = sld [smem:[#allocation0]]
  $region53: #{mlp_batchnorm_forward.1} parent=0
    _
  %s6 = ssub.s32 1, %s4
  %s7 = scalar_select 0, %s6, %s4
  loop: start=0, step=1, limit=4
  $region2: #{mlp_batchnorm_forward.1} parent=0 // loop_pre_header
    _
  $region3: #{mlp_batchnorm_forward.1} parent=0 // loop_header
    %s9 = sphi 0, %s13
    %p10 = scmp.ge.s32.totalorder %s9, 4
    %s17 = sphi 0, %s17
    %s19 = sphi 0, %s17
    %s20 = sphi 0, %s19
    %s34 = sphi 0, %s20
    %s40 = sphi 0, %s42
    %s43 = sphi 0, %s40
    %s44 = sphi 0, %s43
    %s60 = sphi 0, %s44
    %s66 = sphi 0, %s68
    %s69 = sphi 0, %s66
    %s70 = sphi 0, %s69
    %s86 = sphi 0, %s70
    %s90 = sphi 0, %s90
    %s92 = sphi 0, %s90
    %s93 = sphi 0, %s92
    %s107 = sphi 0, %s93
  $region4: #{mlp_batchnorm_forward.1} parent=0 // loop_header_branch
    %12 = sbr.rel (%p10) target = $region8
  $region5: #{mlp_batchnorm_forward.1} parent=0 // loop_body
    %s14 = ssub.s32 %s9, 1
    %s15 = ssub.s32 %s9, 2
    %s16 = sadd.s32 %s9, 1
    %s18 = sadd.s32 %s17, 1
    %p21 = scmp.eq.s32.totalorder %s9, 1
    %p22 = scmp.ne.s32.totalorder %s17, %s19
    %p23 = scmp.eq.s32.totalorder %s9, 0
    %p24 = por %p22, %p23
    %p25 = scmp.ne.s32.totalorder %s17, %s19
    %p26 = scmp.eq.s32.totalorder %s14, 1
    %p27 = por %p25, %p26
    %p28 = scmp.ne.s32.totalorder %s19, %s20
    %p29 = scmp.eq.s32.totalorder %s14, 0
    %p30 = por %p28, %p29
    %p31 = scmp.ne.s32.totalorder %s19, %s20
    %p32 = scmp.eq.s32.totalorder %s15, 1
    %p33 = por %p31, %p32
    %p35 = scmp.ne.s32.totalorder %s20, %s34
    %p36 = scmp.eq.s32.totalorder %s15, 0
    %p37 = por %p35, %p36
    %s38 = ssub.s32 %s9, %s16
    %p39 = scmp.eq.s32.totalorder %s38, 0
    %s41 = sadd.s32 %s40, 1
    %s42 = scalar_select %p39, %s40, %s41
    %p45 = pneg %p39
    %p46 = scmp.eq.s32.totalorder %s9, 1
    %p47 = por %p45, %p46
    %p48 = scmp.ne.s32.totalorder %s40, %s43
    %p49 = scmp.eq.s32.totalorder %s9, 0
    %p50 = por %p48, %p49
    %p51 = scmp.ne.s32.totalorder %s40, %s43
    %p52 = scmp.eq.s32.totalorder %s14, 1
    %p53 = por %p51, %p52
    %p54 = scmp.ne.s32.totalorder %s43, %s44
    %p55 = scmp.eq.s32.totalorder %s14, 0
    %p56 = por %p54, %p55
    %p57 = scmp.ne.s32.totalorder %s43, %s44
    %p58 = scmp.eq.s32.totalorder %s15, 1
    %p59 = por %p57, %p58
    %p61 = scmp.ne.s32.totalorder %s44, %s60
    %p62 = scmp.eq.s32.totalorder %s15, 0
    %p63 = por %p61, %p62
    %s64 = ssub.s32 %s9, %s16
    %p65 = scmp.eq.s32.totalorder %s64, 0
    %s67 = sadd.s32 %s66, 1
    %s68 = scalar_select %p65, %s66, %s67
    %p71 = pneg %p65
    %p72 = scmp.eq.s32.totalorder %s9, 1
    %p73 = por %p71, %p72
    %p74 = scmp.ne.s32.totalorder %s66, %s69
    %p75 = scmp.eq.s32.totalorder %s9, 0
    %p76 = por %p74, %p75
    %p77 = scmp.ne.s32.totalorder %s66, %s69
    %p78 = scmp.eq.s32.totalorder %s14, 1
    %p79 = por %p77, %p78
    %p80 = scmp.ne.s32.totalorder %s69, %s70
    %p81 = scmp.eq.s32.totalorder %s14, 0
    %p82 = por %p80, %p81
    %p83 = scmp.ne.s32.totalorder %s69, %s70
    %p84 = scmp.eq.s32.totalorder %s15, 1
    %p85 = por %p83, %p84
    %p87 = scmp.ne.s32.totalorder %s70, %s86
    %p88 = scmp.eq.s32.totalorder %s15, 0
    %p89 = por %p87, %p88
    %s91 = sadd.s32 %s90, 1
    %p94 = scmp.eq.s32.totalorder %s9, 1
    %p95 = scmp.ne.s32.totalorder %s90, %s92
    %p96 = scmp.eq.s32.totalorder %s9, 0
    %p97 = por %p95, %p96
    %p98 = scmp.ne.s32.totalorder %s90, %s92
    %p99 = scmp.eq.s32.totalorder %s14, 1
    %p100 = por %p98, %p99
    %p101 = scmp.ne.s32.totalorder %s92, %s93
    %p102 = scmp.eq.s32.totalorder %s14, 0
    %p103 = por %p101, %p102
    %p104 = scmp.ne.s32.totalorder %s92, %s93
    %p105 = scmp.eq.s32.totalorder %s15, 1
    %p106 = por %p104, %p105
    %p108 = scmp.ne.s32.totalorder %s93, %s107
    %p109 = scmp.eq.s32.totalorder %s15, 0
    %p110 = por %p108, %p109
    %p111 = scmp.le.s32.totalorder 1, %s9
    %p112 = scmp.lt.s32.totalorder %s9, 3
    %p113 = pnand %p111, %p112
    %p114 = pneg %p113
    // Predicated region
    $region9: #{mlp_batchnorm_forward.1} parent=5 // pred_check
      _
    $region10: #{mlp_batchnorm_forward.1} parent=5 // pred_check_branch
      %116 = sbr.rel (%p113) target = $region12
    $region11: #{mlp_batchnorm_forward.1} parent=5 // pred_region
      %s117 = ssub.s32 %s9, 1
      // Predicated region
      $region13: #{mlp_batchnorm_forward.1} parent=11 // pred_check
        %p118 = pneg %p30
      $region14: #{mlp_batchnorm_forward.1} parent=11 // pred_check_branch
        %120 = sbr.rel (%p118) target = $region16
      $region15: #{mlp_batchnorm_forward.1} parent=11 // pred_region
        _
      $region16: #{mlp_batchnorm_forward.1} parent=11 // pred_fallthru
        _
    $region12: #{mlp_batchnorm_forward.1} parent=5 // pred_fallthru
      _
    %p121 = scmp.lt.s32.totalorder %s9, 2
    // Predicated region
    $region17: #{mlp_batchnorm_forward.1} parent=5 // pred_check
      %p122 = pneg %p121
    $region18: #{mlp_batchnorm_forward.1} parent=5 // pred_check_branch
      %124 = sbr.rel (%p122) target = $region20
    $region19: #{mlp_batchnorm_forward.1} parent=5 // pred_region
      // Predicated region
      $region21: #{mlp_batchnorm_forward.1} parent=19 // pred_check
        %p125 = pneg %p50
      $region22: #{mlp_batchnorm_forward.1} parent=19 // pred_check_branch
        %127 = sbr.rel (%p125) target = $region24
      $region23: #{mlp_batchnorm_forward.1} parent=19 // pred_region
        %p128 = scmp.lt.s32.totalorder %s9, 1
        %s129 = scalar_select %p128, %s9, 1
        %s130 = smul.addr %s129, 16
        %s131 = smul.addr %s130, 4
        %s132 = scalar_lea.vmem %s1, %s131
      $region24: #{mlp_batchnorm_forward.1} parent=19 // pred_fallthru
        _
      // Predicated region
      $region25: #{mlp_batchnorm_forward.1} parent=19 // pred_check
        %p133 = pneg %p76
      $region26: #{mlp_batchnorm_forward.1} parent=19 // pred_check_branch
        %135 = sbr.rel (%p133) target = $region28
      $region27: #{mlp_batchnorm_forward.1} parent=19 // pred_region
        %p136 = scmp.lt.s32.totalorder %s9, 1
        %s137 = scalar_select %p136, %s9, 1
        %s138 = smul.addr %s137, 8
        %s139 = scalar_lea.vmem %s2, %s138
      $region28: #{mlp_batchnorm_forward.1} parent=19 // pred_fallthru
        _
    $region20: #{mlp_batchnorm_forward.1} parent=5 // pred_fallthru
      _
    %p140 = scmp.le.s32.totalorder 1, %s9
    %p141 = scmp.lt.s32.totalorder %s9, 3
    %p142 = pnand %p140, %p141
    %p143 = pneg %p142
    // Predicated region
    $region29: #{mlp_batchnorm_forward.1} parent=5 // pred_check
      _
    $region30: #{mlp_batchnorm_forward.1} parent=5 // pred_check_branch
      %145 = sbr.rel (%p142) target = $region32
    $region31: #{mlp_batchnorm_forward.1} parent=5 // pred_region
      %s146 = ssub.s32 %s9, 1
      %p147 = pneg %p30
      %p148 = pneg %p27
      %p149 = scmp.lt.s32.totalorder %s14, 1
      %s150 = scalar_select %p149, %s14, 1
      %s151 = smul.addr %s150, 16
      %s152 = smul.addr %s151, 4
      %s153 = scalar_lea.vmem %s1, %s152
      %p154 = pneg %p56
      %p155 = pneg %p53
      %p156 = scmp.lt.s32.totalorder %s14, 1
      %s157 = scalar_select %p156, %s14, 1
      %s158 = smul.addr %s157, 8
      %s159 = scalar_lea.vmem %s2, %s158
      %p160 = pneg %p82
      %p161 = pneg %p79
      %p162 = pneg %p103
      %p163 = pneg %p100
      %p164 = scmp.lt.s32.totalorder %s14, 1
      %s165 = scalar_select %p164, %s14, 1
      %s166 = smul.addr %s165, 16
      %s167 = smul.addr %s166, 4
      %s168 = scalar_lea.vmem %s1, %s167
      %p169 = scmp.lt.s32.totalorder %s14, 1
      %s170 = scalar_select %p169, %s14, 1
      %s171 = smul.addr %s170, 8
      %s172 = scalar_lea.vmem %s2, %s171
      %p173 = scmp.eq.s32.totalorder %s14, 0
      // Predicated region
      $region33: #{mlp_batchnorm_forward.1} parent=31 // pred_check
        %p174 = pneg %p173
      $region34: #{mlp_batchnorm_forward.1} parent=31 // pred_check_branch
        %176 = sbr.rel (%p174) target = $region36
      $region35: #{mlp_batchnorm_forward.1} parent=31 // pred_region
        %v177 = vld [vmem:[%s0] sm:$0xff]
        %v178 = vld [vmem:[%s0 + $0x8] sm:$0xff]
        %v179 = vld [vmem:[%s0 + $0x10] sm:$0xff]
        %v180 = vld [vmem:[%s0 + $0x18] sm:$0xff]
        %v181 = vld [vmem:[%s0 + $0x20] sm:$0xff]
        %v182 = vld [vmem:[%s0 + $0x28] sm:$0xff]
        %v183 = vld [vmem:[%s0 + $0x30] sm:$0xff]
        %v184 = vld [vmem:[%s0 + $0x38] sm:$0xff]
        %v185 = vld [vmem:[%s0 + $0x40] sm:$0xff]
        %v186 = vld [vmem:[%s0 + $0x48] sm:$0xff]
        %v187 = vld [vmem:[%s0 + $0x50] sm:$0xff]
        %v188 = vld [vmem:[%s0 + $0x58] sm:$0xff]
        %v189 = vld [vmem:[%s0 + $0x60] sm:$0xff]
        %v190 = vld [vmem:[%s0 + $0x68] sm:$0xff]
        %v191 = vld [vmem:[%s0 + $0x70] sm:$0xff]
        %v192 = vld [vmem:[%s0 + $0x78] sm:$0xff]
        %193 = vst [vmem:[#allocation2] sm:$0xff] %v177
        %194 = vst [vmem:[#allocation2 + $0x8] sm:$0xff] %v178
        %195 = vst [vmem:[#allocation2 + $0x10] sm:$0xff] %v179
        %196 = vst [vmem:[#allocation2 + $0x18] sm:$0xff] %v180
        %197 = vst [vmem:[#allocation2 + $0x20] sm:$0xff] %v181
        %198 = vst [vmem:[#allocation2 + $0x28] sm:$0xff] %v182
        %199 = vst [vmem:[#allocation2 + $0x30] sm:$0xff] %v183
        %200 = vst [vmem:[#allocation2 + $0x38] sm:$0xff] %v184
        %201 = vst [vmem:[#allocation2 + $0x40] sm:$0xff] %v185
        %202 = vst [vmem:[#allocation2 + $0x48] sm:$0xff] %v186
        %203 = vst [vmem:[#allocation2 + $0x50] sm:$0xff] %v187
        %204 = vst [vmem:[#allocation2 + $0x58] sm:$0xff] %v188
        %205 = vst [vmem:[#allocation2 + $0x60] sm:$0xff] %v189
        %206 = vst [vmem:[#allocation2 + $0x68] sm:$0xff] %v190
        %207 = vst [vmem:[#allocation2 + $0x70] sm:$0xff] %v191
        %208 = vst [vmem:[#allocation2 + $0x78] sm:$0xff] %v192
      $region36: #{mlp_batchnorm_forward.1} parent=31 // pred_fallthru
        _
      %v209 = vld [vmem:[#allocation2] sm:$0xff]
      %v210 = vld [vmem:[#allocation2 + $0x8] sm:$0xff]
      %v211 = vld [vmem:[#allocation2 + $0x10] sm:$0xff]
      %v212 = vld [vmem:[#allocation2 + $0x18] sm:$0xff]
      %v213 = vld [vmem:[#allocation2 + $0x20] sm:$0xff]
      %v214 = vld [vmem:[#allocation2 + $0x28] sm:$0xff]
      %v215 = vld [vmem:[#allocation2 + $0x30] sm:$0xff]
      %v216 = vld [vmem:[#allocation2 + $0x38] sm:$0xff]
      %v217 = vld [vmem:[#allocation2 + $0x40] sm:$0xff]
      %v218 = vld [vmem:[#allocation2 + $0x48] sm:$0xff]
      %v219 = vld [vmem:[#allocation2 + $0x50] sm:$0xff]
      %v220 = vld [vmem:[#allocation2 + $0x58] sm:$0xff]
      %v221 = vld [vmem:[#allocation2 + $0x60] sm:$0xff]
      %v222 = vld [vmem:[#allocation2 + $0x68] sm:$0xff]
      %v223 = vld [vmem:[#allocation2 + $0x70] sm:$0xff]
      %v224 = vld [vmem:[#allocation2 + $0x78] sm:$0xff]
      %v225 = vpack.c.bf16 %v210, %v209
      %v226 = vpack.c.bf16 %v212, %v211
      %v227 = vpack.c.bf16 %v214, %v213
      %v228 = vpack.c.bf16 %v216, %v215
      %v229 = vpack.c.bf16 %v218, %v217
      %v230 = vpack.c.bf16 %v220, %v219
      %v231 = vpack.c.bf16 %v222, %v221
      %v232 = vpack.c.bf16 %v224, %v223
      %v233 = vld [vmem:[%s168] sm:$0xf]
      %v234 = vld [vmem:[%s168 + $0x4] sm:$0xf]
      %v235 = vld [vmem:[%s168 + $0x8] sm:$0xf]
      %v236 = vld [vmem:[%s168 + $0xc] sm:$0xf]
      %v237 = vld [vmem:[%s168 + $0x10] sm:$0xf]
      %v238 = vld [vmem:[%s168 + $0x14] sm:$0xf]
      %v239 = vld [vmem:[%s168 + $0x18] sm:$0xf]
      %v240 = vld [vmem:[%s168 + $0x1c] sm:$0xf]
      %v241 = vld [vmem:[%s168 + $0x20] sm:$0xf]
      %v242 = vld [vmem:[%s168 + $0x24] sm:$0xf]
      %v243 = vld [vmem:[%s168 + $0x28] sm:$0xf]
      %v244 = vld [vmem:[%s168 + $0x2c] sm:$0xf]
      %v245 = vld [vmem:[%s168 + $0x30] sm:$0xf]
      %v246 = vld [vmem:[%s168 + $0x34] sm:$0xf]
      %v247 = vld [vmem:[%s168 + $0x38] sm:$0xf]
      %v248 = vld [vmem:[%s168 + $0x3c] sm:$0xf]
      %v249 = vld [vmem:[%s172] sm:$0x1]
      %v250 = vperm.slane %v249, 0
      %v267 = vunpack.c.l.b16 %v233
      %v268 = vunpack.c.l.b16 %v234
      %v269 = vunpack.c.l.b16 %v235
      %v270 = vunpack.c.l.b16 %v236
      %v271 = vunpack.c.l.b16 %v237
      %v272 = vunpack.c.l.b16 %v238
      %v273 = vunpack.c.l.b16 %v239
      %v274 = vunpack.c.l.b16 %v240
      %v275 = vunpack.c.l.b16 %v241
      %v276 = vunpack.c.l.b16 %v242
      %v277 = vunpack.c.l.b16 %v243
      %v278 = vunpack.c.l.b16 %v244
      %v279 = vunpack.c.l.b16 %v245
      %v280 = vunpack.c.l.b16 %v246
      %v281 = vunpack.c.l.b16 %v247
      %v282 = vunpack.c.l.b16 %v248
      %v283 = vpack.c.b16 %v268, %v267
      %v284 = vpack.c.b16 %v270, %v269
      %v285 = vpack.c.b16 %v272, %v271
      %v286 = vpack.c.b16 %v274, %v273
      %v287 = vpack.c.b16 %v276, %v275
      %v288 = vpack.c.b16 %v278, %v277
      %v289 = vpack.c.b16 %v280, %v279
      %v290 = vpack.c.b16 %v282, %v281
      %299 = vmatpush.bf16.msra.mxu0 %v290
      %300 = vmatpush.bf16.msra.mxu0 %v289
      %301 = vmatpush.bf16.msra.mxu0 %v288
      %302 = vmatpush.bf16.msra.mxu0 %v287
      %303 = vmatpush.bf16.msra.mxu0 %v286
      %304 = vmatpush.bf16.msra.mxu0 %v285
      %305 = vmatpush.bf16.msra.mxu0 %v284
      %306 = vmatpush.bf16.msra.mxu0 %v283
      %307 = vmatmul.bf16.gmra.mxu0 %v225
      %v308 = vpop.f32.mrf.mxu0
      %v309 = vadd.f32 %v250, %v308
      %v310 = vpop.f32.mrf.mxu0
      %v311 = vadd.f32 %v250, %v310
      %312 = vmatmul.bf16.gmra.mxu0 %v226
      %v313 = vpop.f32.mrf.mxu0
      %v314 = vadd.f32 %v250, %v313
      %v315 = vpop.f32.mrf.mxu0
      %v316 = vadd.f32 %v250, %v315
      %317 = vmatmul.bf16.gmra.mxu0 %v227
      %v318 = vpop.f32.mrf.mxu0
      %v319 = vadd.f32 %v250, %v318
      %v320 = vpop.f32.mrf.mxu0
      %v321 = vadd.f32 %v250, %v320
      %322 = vmatmul.bf16.gmra.mxu0 %v228
      %v323 = vpop.f32.mrf.mxu0
      %v324 = vadd.f32 %v250, %v323
      %v325 = vpop.f32.mrf.mxu0
      %v326 = vadd.f32 %v250, %v325
      %327 = vmatmul.bf16.gmra.mxu0 %v229
      %v328 = vpop.f32.mrf.mxu0
      %v329 = vadd.f32 %v250, %v328
      %v330 = vpop.f32.mrf.mxu0
      %v331 = vadd.f32 %v250, %v330
      %332 = vmatmul.bf16.gmra.mxu0 %v230
      %v333 = vpop.f32.mrf.mxu0
      %v334 = vadd.f32 %v250, %v333
      %v335 = vpop.f32.mrf.mxu0
      %v336 = vadd.f32 %v250, %v335
      %337 = vmatmul.bf16.gmra.mxu0 %v231
      %v338 = vpop.f32.mrf.mxu0
      %v339 = vadd.f32 %v250, %v338
      %v340 = vpop.f32.mrf.mxu0
      %v341 = vadd.f32 %v250, %v340
      %342 = vmatmul.bf16.gmra.mxu0 %v232
      %v343 = vpop.f32.mrf.mxu0
      %v344 = vadd.f32 %v250, %v343
      %v345 = vpop.f32.mrf.mxu0
      %v346 = vadd.f32 %v250, %v345
      %347 = vdwg.mxu0
      %v348 = vmax.f32 %v309, 0.0
      %v349 = vmax.f32 %v311, 0.0
      %v350 = vmax.f32 %v314, 0.0
      %v351 = vmax.f32 %v316, 0.0
      %v352 = vmax.f32 %v319, 0.0
      %v353 = vmax.f32 %v321, 0.0
      %v354 = vmax.f32 %v324, 0.0
      %v355 = vmax.f32 %v326, 0.0
      %v356 = vmax.f32 %v329, 0.0
      %v357 = vmax.f32 %v331, 0.0
      %v358 = vmax.f32 %v334, 0.0
      %v359 = vmax.f32 %v336, 0.0
      %v360 = vmax.f32 %v339, 0.0
      %v361 = vmax.f32 %v341, 0.0
      %v362 = vmax.f32 %v344, 0.0
      %v363 = vmax.f32 %v346, 0.0
      %v364 = vadd.f32 %v348, %v349
      %v365 = vadd.f32 %v364, %v350
      %v366 = vadd.f32 %v365, %v351
      %v367 = vadd.f32 %v366, %v352
      %v368 = vadd.f32 %v367, %v353
      %v369 = vadd.f32 %v368, %v354
      %v370 = vadd.f32 %v369, %v355
      %v371 = vadd.f32 %v370, %v356
      %v372 = vadd.f32 %v371, %v357
      %v373 = vadd.f32 %v372, %v358
      %v374 = vadd.f32 %v373, %v359
      %v375 = vadd.f32 %v374, %v360
      %v376 = vadd.f32 %v375, %v361
      %v377 = vadd.f32 %v376, %v362
      %v378 = vadd.f32 %v377, %v363
      %v379 = vrot.slane %v378, 4
      %v380 = vadd.f32 %v378, %v379
      %v381 = vrot.slane %v380, 2
      %v382 = vadd.f32 %v380, %v381
      %v383 = vrot.slane %v382, 1
      %v384 = vadd.f32 %v382, %v383
      %v385 = vmul.f32 %v348, %v348
      %v386 = vmul.f32 %v349, %v349
      %v387 = vmul.f32 %v350, %v350
      %v388 = vmul.f32 %v351, %v351
      %v389 = vmul.f32 %v352, %v352
      %v390 = vmul.f32 %v353, %v353
      %v391 = vmul.f32 %v354, %v354
      %v392 = vmul.f32 %v355, %v355
      %v393 = vmul.f32 %v356, %v356
      %v394 = vmul.f32 %v357, %v357
      %v395 = vmul.f32 %v358, %v358
      %v396 = vmul.f32 %v359, %v359
      %v397 = vmul.f32 %v360, %v360
      %v398 = vmul.f32 %v361, %v361
      %v399 = vmul.f32 %v362, %v362
      %v400 = vmul.f32 %v363, %v363
      %v401 = vadd.f32 %v385, %v386
      %v402 = vadd.f32 %v401, %v387
      %v403 = vadd.f32 %v402, %v388
      %v404 = vadd.f32 %v403, %v389
      %v405 = vadd.f32 %v404, %v390
      %v406 = vadd.f32 %v405, %v391
      %v407 = vadd.f32 %v406, %v392
      %v408 = vadd.f32 %v407, %v393
      %v409 = vadd.f32 %v408, %v394
      %v410 = vadd.f32 %v409, %v395
      %v411 = vadd.f32 %v410, %v396
      %v412 = vadd.f32 %v411, %v397
      %v413 = vadd.f32 %v412, %v398
      %v414 = vadd.f32 %v413, %v399
      %v415 = vadd.f32 %v414, %v400
      %v416 = vrot.slane %v415, 4
      %v417 = vadd.f32 %v415, %v416
      %v418 = vrot.slane %v417, 2
      %v419 = vadd.f32 %v417, %v418
      %v420 = vrot.slane %v419, 1
      %v421 = vadd.f32 %v419, %v420
      %v422 = vmul.f32 %v384, 0.0078125
      %v423 = vmul.f32 %v421, 0.0078125
      %v424 = vmul.f32 %v422, %v422
      %v425 = vsub.f32 %v423, %v424
      %v426 = vmax.f32 %v425, 0.0
      %v427 = vsub.f32 %v348, %v422
      %v428 = vsub.f32 %v349, %v422
      %v429 = vsub.f32 %v350, %v422
      %v430 = vsub.f32 %v351, %v422
      %v431 = vsub.f32 %v352, %v422
      %v432 = vsub.f32 %v353, %v422
      %v433 = vsub.f32 %v354, %v422
      %v434 = vsub.f32 %v355, %v422
      %v435 = vsub.f32 %v356, %v422
      %v436 = vsub.f32 %v357, %v422
      %v437 = vsub.f32 %v358, %v422
      %v438 = vsub.f32 %v359, %v422
      %v439 = vsub.f32 %v360, %v422
      %v440 = vsub.f32 %v361, %v422
      %v441 = vsub.f32 %v362, %v422
      %v442 = vsub.f32 %v363, %v422
      %v443 = vadd.f32 %v426, 1e-05
      %v444 = vrsqrt.pop %v443
      %v445 = vmul.f32 %v444, %v443
      %v446 = vmul.f32 %v445, %v444
      %v447 = vmul.f32 0.5, %v446
      %v448 = vsub.f32 1.5, %v447
      %v449 = vmul.f32 %v444, %v448
      %vm450 = vweird.f32 %v443
      %vm451 = vweird.f32 %v444
      %vm452 = vmor %vm450, %vm451
      %v453 = vsel %vm452, %v444, %v449
      %v454 = vmul.f32 %v427, %v453
      %v455 = vmul.f32 %v428, %v453
      %v456 = vmul.f32 %v429, %v453
      %v457 = vmul.f32 %v430, %v453
      %v458 = vmul.f32 %v431, %v453
      %v459 = vmul.f32 %v432, %v453
      %v460 = vmul.f32 %v433, %v453
      %v461 = vmul.f32 %v434, %v453
      %v462 = vmul.f32 %v435, %v453
      %v463 = vmul.f32 %v436, %v453
      %v464 = vmul.f32 %v437, %v453
      %v465 = vmul.f32 %v438, %v453
      %v466 = vmul.f32 %v439, %v453
      %v467 = vmul.f32 %v440, %v453
      %v468 = vmul.f32 %v441, %v453
      %v469 = vmul.f32 %v442, %v453
      %v470 = vld [vmem:[%s172 + $0x1] sm:$0x1]
      %v471 = vperm.slane %v470, 0
      %v472 = vmul.f32 %v454, %v471
      %v473 = vmul.f32 %v455, %v471
      %v474 = vmul.f32 %v456, %v471
      %v475 = vmul.f32 %v457, %v471
      %v476 = vmul.f32 %v458, %v471
      %v477 = vmul.f32 %v459, %v471
      %v478 = vmul.f32 %v460, %v471
      %v479 = vmul.f32 %v461, %v471
      %v480 = vmul.f32 %v462, %v471
      %v481 = vmul.f32 %v463, %v471
      %v482 = vmul.f32 %v464, %v471
      %v483 = vmul.f32 %v465, %v471
      %v484 = vmul.f32 %v466, %v471
      %v485 = vmul.f32 %v467, %v471
      %v486 = vmul.f32 %v468, %v471
      %v487 = vmul.f32 %v469, %v471
      %v488 = vld [vmem:[%s172 + $0x2] sm:$0x1]
      %v489 = vperm.slane %v488, 0
      %v490 = vadd.f32 %v472, %v489
      %v491 = vadd.f32 %v473, %v489
      %v492 = vadd.f32 %v474, %v489
      %v493 = vadd.f32 %v475, %v489
      %v494 = vadd.f32 %v476, %v489
      %v495 = vadd.f32 %v477, %v489
      %v496 = vadd.f32 %v478, %v489
      %v497 = vadd.f32 %v479, %v489
      %v498 = vadd.f32 %v480, %v489
      %v499 = vadd.f32 %v481, %v489
      %v500 = vadd.f32 %v482, %v489
      %v501 = vadd.f32 %v483, %v489
      %v502 = vadd.f32 %v484, %v489
      %v503 = vadd.f32 %v485, %v489
      %v504 = vadd.f32 %v486, %v489
      %v505 = vadd.f32 %v487, %v489
      %506 = vst [vmem:[#allocation2] sm:$0xff] %v490
      %507 = vst [vmem:[#allocation2 + $0x8] sm:$0xff] %v491
      %508 = vst [vmem:[#allocation2 + $0x10] sm:$0xff] %v492
      %509 = vst [vmem:[#allocation2 + $0x18] sm:$0xff] %v493
      %510 = vst [vmem:[#allocation2 + $0x20] sm:$0xff] %v494
      %511 = vst [vmem:[#allocation2 + $0x28] sm:$0xff] %v495
      %512 = vst [vmem:[#allocation2 + $0x30] sm:$0xff] %v496
      %513 = vst [vmem:[#allocation2 + $0x38] sm:$0xff] %v497
      %514 = vst [vmem:[#allocation2 + $0x40] sm:$0xff] %v498
      %515 = vst [vmem:[#allocation2 + $0x48] sm:$0xff] %v499
      %516 = vst [vmem:[#allocation2 + $0x50] sm:$0xff] %v500
      %517 = vst [vmem:[#allocation2 + $0x58] sm:$0xff] %v501
      %518 = vst [vmem:[#allocation2 + $0x60] sm:$0xff] %v502
      %519 = vst [vmem:[#allocation2 + $0x68] sm:$0xff] %v503
      %520 = vst [vmem:[#allocation2 + $0x70] sm:$0xff] %v504
      %521 = vst [vmem:[#allocation2 + $0x78] sm:$0xff] %v505
      %p522 = scmp.eq.s32.totalorder %s14, 1
      // Predicated region
      $region37: #{mlp_batchnorm_forward.1} parent=31 // pred_check
        %p523 = pneg %p522
      $region38: #{mlp_batchnorm_forward.1} parent=31 // pred_check_branch
        %525 = sbr.rel (%p523) target = $region40
      $region39: #{mlp_batchnorm_forward.1} parent=31 // pred_region
        %526 = vst [vmem:[%s3] sm:$0xff] %v490
        %527 = vst [vmem:[%s3 + $0x8] sm:$0xff] %v491
        %528 = vst [vmem:[%s3 + $0x10] sm:$0xff] %v492
        %529 = vst [vmem:[%s3 + $0x18] sm:$0xff] %v493
        %530 = vst [vmem:[%s3 + $0x20] sm:$0xff] %v494
        %531 = vst [vmem:[%s3 + $0x28] sm:$0xff] %v495
        %532 = vst [vmem:[%s3 + $0x30] sm:$0xff] %v496
        %533 = vst [vmem:[%s3 + $0x38] sm:$0xff] %v497
        %534 = vst [vmem:[%s3 + $0x40] sm:$0xff] %v498
        %535 = vst [vmem:[%s3 + $0x48] sm:$0xff] %v499
        %536 = vst [vmem:[%s3 + $0x50] sm:$0xff] %v500
        %537 = vst [vmem:[%s3 + $0x58] sm:$0xff] %v501
        %538 = vst [vmem:[%s3 + $0x60] sm:$0xff] %v502
        %539 = vst [vmem:[%s3 + $0x68] sm:$0xff] %v503
        %540 = vst [vmem:[%s3 + $0x70] sm:$0xff] %v504
        %541 = vst [vmem:[%s3 + $0x78] sm:$0xff] %v505
      $region40: #{mlp_batchnorm_forward.1} parent=31 // pred_fallthru
        _
      // Predicated region
      $region41: #{mlp_batchnorm_forward.1} parent=31 // pred_check
        %p542 = pneg %p100
      $region42: #{mlp_batchnorm_forward.1} parent=31 // pred_check_branch
        %544 = sbr.rel (%p542) target = $region44
      $region43: #{mlp_batchnorm_forward.1} parent=31 // pred_region
        _
      $region44: #{mlp_batchnorm_forward.1} parent=31 // pred_fallthru
        _
      // Predicated region
      $region45: #{mlp_batchnorm_forward.1} parent=31 // pred_check
        %p545 = pneg %p100
      $region46: #{mlp_batchnorm_forward.1} parent=31 // pred_check_branch
        %547 = sbr.rel (%p545) target = $region48
      $region47: #{mlp_batchnorm_forward.1} parent=31 // pred_region
        _
      $region48: #{mlp_batchnorm_forward.1} parent=31 // pred_fallthru
        _
    $region32: #{mlp_batchnorm_forward.1} parent=5 // pred_fallthru
      _
    %p548 = scmp.le.s32.totalorder 2, %s9
    // Predicated region
    $region49: #{mlp_batchnorm_forward.1} parent=5 // pred_check
      %p549 = pneg %p548
    $region50: #{mlp_batchnorm_forward.1} parent=5 // pred_check_branch
      %551 = sbr.rel (%p549) target = $region52
    $region51: #{mlp_batchnorm_forward.1} parent=5 // pred_region
      %s552 = ssub.s32 %s9, 2
    $region52: #{mlp_batchnorm_forward.1} parent=5 // pred_fallthru
      _
  $region6: #{mlp_batchnorm_forward.1} parent=0 // loop_footer
    %s13 = sadd.s32 1, %s9
  $region7: #{mlp_batchnorm_forward.1} parent=0 // loop_footer_branch
    %8 = sbr.rel target = $region3
  $region8: #{mlp_batchnorm_forward.1} parent=0 // loop_exit
    _

</llo_original>
